<compile_context>
chip_gen: v7x
topology: tpu7x:2x2x1
jax: 0.10.0
libtpu: 0.0.40
codegen_flags: <defaults>
</compile_context>

<pallas_src>
import functools

import jax
import jax.numpy as jnp
from jax.experimental import pallas as pl
from jax.experimental.pallas import tpu as pltpu


def _round_up(x, m):
    return ((x + m - 1) // m) * m


def _pad_to(a, shape):
    pads = [(0, s - d) for d, s in zip(a.shape, shape)]
    if all(p == (0, 0) for p in pads):
        return a
    return jnp.pad(a, pads)


# --------------------------------------------------------------------------
# Kernel 1: D^{-1/2}, self-loop folded into the degree.  Streams the same
# narrow adj copy as the aggregation pass; accumulates directly in the output.
# --------------------------------------------------------------------------
def degree_kernel(adj_ref, d_ref):
    k = pl.program_id(1)

    @pl.when(k == 0)
    def _():
        # Self-loop: degree = sum(adj, axis=1) + 1  -> start the accumulator at 1.
        d_ref[...] = jnp.ones_like(d_ref)

    d_ref[...] += jnp.sum(adj_ref[...].astype(jnp.float32), axis=1,
                          keepdims=True)

    @pl.when(k == pl.num_programs(1) - 1)
    def _():
        # degree >= 1 (non-negative adjacency + self-loop), rsqrt always finite.
        d_ref[...] = jax.lax.rsqrt(d_ref[...])


# --------------------------------------------------------------------------
# Kernel 2: xw_s = d * (x @ W)   -- computed once, row-tiled, pre-scaled by d
# so the adjacency tile hits the MXU unmodified.
# --------------------------------------------------------------------------
def xw_scaled_kernel(x_ref, w_ref, d_ref, o_ref):
    o_ref[...] = d_ref[...] * jnp.dot(x_ref[...], w_ref[...],
                                      preferred_element_type=jnp.float32)


# --------------------------------------------------------------------------
# Kernel 3a (main path): xw_s fully VMEM-resident.
#   out = relu( d_i * ( adj @ xw_s + xw_s[i] ) + b )
# --------------------------------------------------------------------------
def gcn_agg_resident_kernel(adj_ref, d_ref, xw_ref, b_ref, o_ref, *,
                            tn, mxu_dtype):
    i = pl.program_id(0)
    k = pl.program_id(1)

    @pl.when(k == 0)
    def _():
        o_ref[...] = jnp.zeros_like(o_ref)

    start_k = pl.multiple_of(k * tn, tn)
    xw_k = xw_ref[pl.ds(start_k, tn), :]                    # (tn, f_pad) f32
    o_ref[...] += jnp.dot(adj_ref[...], xw_k.astype(mxu_dtype),
                          preferred_element_type=jnp.float32)

    @pl.when(k == pl.num_programs(1) - 1)
    def _():
        start_i = pl.multiple_of(i * tn, tn)
        xw_i = xw_ref[pl.ds(start_i, tn), :]                # self-loop term (f32)
        out = d_ref[...] * (o_ref[...] + xw_i) + b_ref[...]
        o_ref[...] = jnp.maximum(out, 0.0)


# --------------------------------------------------------------------------
# Kernel 3b (fallback): xw_s streamed per K block (very large graphs only).
# --------------------------------------------------------------------------
def gcn_agg_stream_kernel(adj_ref, d_ref, xwk_ref, xwi_ref, b_ref, o_ref, *,
                          mxu_dtype):
    k = pl.program_id(1)

    @pl.when(k == 0)
    def _():
        o_ref[...] = jnp.zeros_like(o_ref)

    o_ref[...] += jnp.dot(adj_ref[...], xwk_ref[...].astype(mxu_dtype),
                          preferred_element_type=jnp.float32)

    @pl.when(k == pl.num_programs(1) - 1)
    def _():
        out = d_ref[...] * (o_ref[...] + xwi_ref[...]) + b_ref[...]
        o_ref[...] = jnp.maximum(out, 0.0)


# --------------------------------------------------------------------------
# Wrapper
# --------------------------------------------------------------------------
def gcn_layer(x, adj, weight, bias, *, tile_n=1024,
              adj_dtype=jnp.bfloat16,
              xw_resident_max_bytes=16 * 1024 * 1024,
              vmem_limit_bytes=48 * 1024 * 1024):
    """x: (N, F_in), adj: (N, N), weight: (F_in, F_out), bias: (F_out,).

    adj_dtype: dtype the (single) HBM copy of adj is streamed in.  bf16 halves
    the dominant HBM traffic and is exact for 0/1 adjacency; pass jnp.float32
    for bit-tight results on weighted graphs.
    """
    n, f_in = x.shape
    f_out = weight.shape[1]

    # Lane-dense output: pad F_out up to a multiple of 128 (sliced off below).
    f_pad = _round_up(f_out, 128)

    # Row/K tiling of adj.  Small graphs use a single full-array block; large
    # graphs get (tile_n, tile_n) tiles (double-buffered by BlockSpec).
    if n <= tile_n:
        tn, n_pad = n, n
    else:
        tn, n_pad = tile_n, _round_up(n, tile_n)
    n_tiles = n_pad // tn

    mxu_dtype = jnp.dtype(adj_dtype)

    x_p = _pad_to(x.astype(jnp.float32), (n_pad, f_in))
    # Single narrow adj copy in HBM, used by BOTH the degree and agg passes.
    adj_mm = _pad_to(adj.astype(adj_dtype), (n_pad, n_pad))
    w_p = _pad_to(weight.astype(jnp.float32), (f_in, f_pad))
    b_p = _pad_to(bias.astype(jnp.float32).reshape(1, f_out), (1, f_pad))

    grid2 = (n_tiles, n_tiles)
    cparams2 = pltpu.CompilerParams(
        dimension_semantics=("parallel", "arbitrary"),   # rows shard across TCs
        vmem_limit_bytes=vmem_limit_bytes)
    cparams1 = pltpu.CompilerParams(
        dimension_semantics=("parallel",),
        vmem_limit_bytes=vmem_limit_bytes)

    # ---- D^{-1/2} (full row sums needed before the pre-scaled xw) -----------
    d = pl.pallas_call(
        degree_kernel,
        out_shape=jax.ShapeDtypeStruct((n_pad, 1), jnp.float32),
        grid_spec=pltpu.PrefetchScalarGridSpec(
            num_scalar_prefetch=0,
            grid=grid2,
            in_specs=[pl.BlockSpec((tn, tn), lambda i, k: (i, k))],
            out_specs=pl.BlockSpec((tn, 1), lambda i, k: (i, 0))),
        compiler_params=cparams2,
    )(adj_mm)

    # ---- xw_s = d * (x @ W), computed once -----------------------------------
    xw_s = pl.pallas_call(
        xw_scaled_kernel,
        out_shape=jax.ShapeDtypeStruct((n_pad, f_pad), jnp.float32),
        grid_spec=pltpu.PrefetchScalarGridSpec(
            num_scalar_prefetch=0,
            grid=(n_tiles,),
            in_specs=[pl.BlockSpec((tn, f_in), lambda i: (i, 0)),
                      pl.BlockSpec((f_in, f_pad), lambda i: (0, 0)),
                      pl.BlockSpec((tn, 1), lambda i: (i, 0))],
            out_specs=pl.BlockSpec((tn, f_pad), lambda i: (i, 0))),
        compiler_params=cparams1,
    )(x_p, w_p, d)

    out_shape = jax.ShapeDtypeStruct((n_pad, f_pad), jnp.float32)
    xw_bytes = n_pad * f_pad * 4

    if xw_bytes <= xw_resident_max_bytes:
        # ---- main aggregation, xw_s fully VMEM-resident ----------------------
        out = pl.pallas_call(
            functools.partial(gcn_agg_resident_kernel, tn=tn,
                              mxu_dtype=mxu_dtype),
            out_shape=out_shape,
            grid_spec=pltpu.PrefetchScalarGridSpec(
                num_scalar_prefetch=0,
                grid=grid2,
                in_specs=[
                    pl.BlockSpec((tn, tn), lambda i, k: (i, k)),        # adj tile
                    pl.BlockSpec((tn, 1), lambda i, k: (i, 0)),         # d rows
                    pl.BlockSpec((n_pad, f_pad), lambda i, k: (0, 0)),  # xw_s (resident)
                    pl.BlockSpec((1, f_pad), lambda i, k: (0, 0)),      # bias
                ],
                out_specs=pl.BlockSpec((tn, f_pad), lambda i, k: (i, 0))),
            compiler_params=cparams2,
        )(adj_mm, d, xw_s, b_p)
    else:
        # ---- fallback: stream xw_s K blocks (huge graphs) --------------------
        out = pl.pallas_call(
            functools.partial(gcn_agg_stream_kernel, mxu_dtype=mxu_dtype),
            out_shape=out_shape,
            grid_spec=pltpu.PrefetchScalarGridSpec(
                num_scalar_prefetch=0,
                grid=grid2,
                in_specs=[
                    pl.BlockSpec((tn, tn), lambda i, k: (i, k)),        # adj tile
                    pl.BlockSpec((tn, 1), lambda i, k: (i, 0)),         # d rows
                    pl.BlockSpec((tn, f_pad), lambda i, k: (k, 0)),     # xw_s K block
                    pl.BlockSpec((tn, f_pad), lambda i, k: (i, 0)),     # xw_s row block
                    pl.BlockSpec((1, f_pad), lambda i, k: (0, 0)),      # bias
                ],
                out_specs=pl.BlockSpec((tn, f_pad), lambda i, k: (i, 0))),
            compiler_params=cparams2,
        )(adj_mm, d, xw_s, xw_s, b_p)

    return out[:n, :f_out]


# --------------------------------------------------------------------------
# Reference (same math as the PyTorch forward)
# --------------------------------------------------------------------------
def gcn_reference(x, adj, weight, bias):
    n = adj.shape[0]
    adj_hat = adj + jnp.eye(n, dtype=jnp.float32)
    deg = adj_hat.sum(axis=1)
    dis = jnp.power(deg, -0.5)
    dis = jnp.where(jnp.isinf(dis), 0.0, dis)
    norm_adj = adj_hat * dis[:, None] * dis[None, :]
    return jnp.maximum(norm_adj @ (x @ weight) + bias, 0.0)


if __name__ == "__main__":
    key = jax.random.PRNGKey(0)

    def make_case(k, n, f_in, f_out):
        k_x, k_adj, k_w = jax.random.split(k, 3)
        x = jax.random.normal(k_x, (n, f_in), dtype=jnp.float32)
        a = (jax.random.uniform(k_adj, (n, n)) > 0.5).astype(jnp.float32)
        adj = jnp.triu(a, 1)
        adj = adj + adj.T  # symmetric 0/1 adjacency, empty diagonal
        weight = jax.random.normal(k_w, (f_in, f_out), dtype=jnp.float32)
        bias = jnp.zeros((f_out,), dtype=jnp.float32)
        return x, adj, weight, bias

    k1, k2 = jax.random.split(key)

    # 1) Small case (single-tile path), f32 adj: tight tolerance.
    x, adj, w, b = make_case(k1, 8, 16, 32)
    out = jax.block_until_ready(gcn_layer(x, adj, w, b, adj_dtype=jnp.float32))
    ref = gcn_reference(x, adj, w, b)
    assert out.shape == (8, 32)
    assert jnp.allclose(out, ref, atol=1e-4, rtol=1e-4)

    # 2) Multi-tile (row, K) grid, f32 adj: tight tolerance.
    x, adj, w, b = make_case(k2, 512, 16, 32)
    ref = gcn_reference(x, adj, w, b)
    out = jax.block_until_ready(
        gcn_layer(x, adj, w, b, tile_n=256, adj_dtype=jnp.float32))
    assert out.shape == (512, 32)
    assert jnp.allclose(out, ref, atol=1e-3, rtol=1e-3)

    # 3) Default bf16 adj stream (0/1 adjacency is exact in bf16; xw MXU operand
    #    is bf16-rounded, hence looser tolerance), resident-xw path.
    out_bf16 = jax.block_until_ready(gcn_layer(x, adj, w, b, tile_n=256))
    assert jnp.allclose(out_bf16, ref, atol=5e-2, rtol=5e-2)

    # 4) Force the streamed-xw fallback path (as used for very large graphs).
    out_stream = jax.block_until_ready(
        gcn_layer(x, adj, w, b, tile_n=256, xw_resident_max_bytes=0))
    assert jnp.allclose(out_stream, ref, atol=5e-2, rtol=5e-2)

    print("KERNEL_OK")
</pallas_src>

<mosaic_0001>
module attributes {stable_mosaic.version = 11 : i64} {
  func.func @degree_kernel(%arg0: i32, %arg1: i32, %arg2: memref<8x8xf32, #tpu.memory_space<vmem>>, %arg3: memref<8x1xf32, #tpu.memory_space<vmem>>) attributes {dimension_semantics = [#tpu.dimension_semantics<parallel>, #tpu.dimension_semantics<arbitrary>], iteration_bounds = array<i64: 1, 1>, scalar_prefetch = 0 : i64, scratch_operands = 0 : i64, tpu.core_type = #tpu.core_type<tc>, window_params = [{transform_indices = @transform_0, window_bounds = array<i64: 8, 8>}, {transform_indices = @transform_1, window_bounds = array<i64: 8, 1>}]} {
    %c0_i32 = arith.constant 0 : i32
    %0 = arith.cmpi eq, %arg1, %c0_i32 : i32
    %1 = arith.extui %0 : i1 to i32
    %c0_i32_0 = arith.constant 0 : i32
    %2 = arith.cmpi ne, %1, %c0_i32_0 : i32
    scf.if %2 {
      %cst_8 = arith.constant 1.000000e+00 : f32
      %12 = vector.broadcast %cst_8 : f32 to vector<8x1xf32>
      %c0_9 = arith.constant 0 : index
      %c0_10 = arith.constant 0 : index
      %13 = vector.load %arg3[%c0_9, %c0_10] : memref<8x1xf32, #tpu.memory_space<vmem>>, vector<8x1xf32>
      tpu.vector_store %arg3[%c0_9, %c0_10], %12 {strides = array<i32>} : memref<8x1xf32, #tpu.memory_space<vmem>>, vector<8x1xf32>,
    } else {
    }
    %c0 = arith.constant 0 : index
    %c0_1 = arith.constant 0 : index
    %3 = vector.load %arg3[%c0, %c0_1] : memref<8x1xf32, #tpu.memory_space<vmem>>, vector<8x1xf32>
    %c0_2 = arith.constant 0 : index
    %c0_3 = arith.constant 0 : index
    %4 = vector.load %arg2[%c0_2, %c0_3] : memref<8x8xf32, #tpu.memory_space<vmem>>, vector<8x8xf32>
    %cst = arith.constant dense<0.000000e+00> : vector<8xf32>
    %5 = vector.multi_reduction <add>, %4, %cst [1] : vector<8x8xf32> to vector<8xf32>
    %6 = vector.shape_cast %5 : vector<8xf32> to vector<8x1xf32>
    %7 = arith.addf %3, %6 : vector<8x1xf32>
    %c0_4 = arith.constant 0 : index
    %c0_5 = arith.constant 0 : index
    %8 = vector.load %arg3[%c0_4, %c0_5] : memref<8x1xf32, #tpu.memory_space<vmem>>, vector<8x1xf32>
    tpu.vector_store %arg3[%c0_4, %c0_5], %7 {strides = array<i32>} : memref<8x1xf32, #tpu.memory_space<vmem>>, vector<8x1xf32>,
    %c0_i32_6 = arith.constant 0 : i32
    %9 = arith.cmpi eq, %arg1, %c0_i32_6 : i32
    %10 = arith.extui %9 : i1 to i32
    %c0_i32_7 = arith.constant 0 : i32
    %11 = arith.cmpi ne, %10, %c0_i32_7 : i32
    scf.if %11 {
      %c0_8 = arith.constant 0 : index
      %c0_9 = arith.constant 0 : index
      %12 = vector.load %arg3[%c0_8, %c0_9] : memref<8x1xf32, #tpu.memory_space<vmem>>, vector<8x1xf32>
      %13 = math.rsqrt %12 : vector<8x1xf32>
      %c0_10 = arith.constant 0 : index
      %c0_11 = arith.constant 0 : index
      %14 = vector.load %arg3[%c0_10, %c0_11] : memref<8x1xf32, #tpu.memory_space<vmem>>, vector<8x1xf32>
      tpu.vector_store %arg3[%c0_10, %c0_11], %13 {strides = array<i32>} : memref<8x1xf32, #tpu.memory_space<vmem>>, vector<8x1xf32>,
    } else {
    }
    return
  }
  func.func @transform_0(%arg0: i32, %arg1: i32) -> (i32, i32) {
    %c0_i32 = arith.constant 0 : i32
    return %arg0, %arg1 : i32, i32
  }
  func.func @transform_1(%arg0: i32, %arg1: i32) -> (i32, i32) {
    %c0_i32 = arith.constant 0 : i32
    %c0_i32_0 = arith.constant 0 : i32
    return %arg0, %c0_i32 : i32, i32
  }
}

</mosaic_0001>

<llo_original>
// kernel: tpu_custom_call.1
$region0: #{tpu_custom_call.1}
  #allocation0 [shape = 'u32[]', space=smem, size = 0x4, offset = 0x4, fixed_abs, tag = 'smem constant byte address 0x4 - core index']
  #allocation1 [shape = 'u32[144,128]{1,0:T(1,128)}', space=vmem, size = 0x12000, scoped, tag = 'internal scratch']
  %s0 = inlined_call_operand.hbm [shape: f32[8,8], index: 0, kind: input, shape index: {}]
  %s1 = inlined_call_operand.vmem [shape: f32[8,1], index: 1, kind: output, shape index: {}]
  %s2 = sld [smem:[#allocation0]]
  $region26: #{tpu_custom_call.1} parent=0
    _
  %s4 = ssub.s32 1, %s2
  %s5 = scalar_select 0, %s4, %s2
  $region1: #{tpu_custom_call.1} parent=0
    #allocation2 [shape = 'u8[4096]{0}', space=vmem, size = 0x1000, scoped, tag = 'input window, operand 0, single buffered']
    #allocation3 [shape = 's32[1]{0}', space=sflag, size = 0x4, scoped, tag = 'scoped memory for tpu_custom_call.1']
    %6 = vsyncpa [#allocation3], 0
    // Predicated region
    $region2: #{tpu_custom_call.1} parent=1 // pred_check
      _
    $region3: #{tpu_custom_call.1} parent=1 // pred_check_branch
      %8 = sbr.rel (0) target = $region5
    $region4: #{tpu_custom_call.1} parent=1 // pred_region
      %s10 = ssub.s32 128, 128
      %11 = vsyncadd [#allocation3], %s10
      %s13 = sshll.u32 [#allocation2], 4
      %s14 = int_to_ptr.vmem [resolvable:$true] %s13
      %16 = dma.hbm_to_vmem [thread:$0]  %s0, 128, %s14, [#allocation3]
    $region5: #{tpu_custom_call.1} parent=1 // pred_fallthru
      _
    // Predicated region
    $region6: #{tpu_custom_call.1} parent=1 // pred_check
      _
    $region7: #{tpu_custom_call.1} parent=1 // pred_check_branch
      %18 = sbr.rel (0) target = $region9
    $region8: #{tpu_custom_call.1} parent=1 // pred_region
      %19 = dma.done [#allocation3], 128
    $region9: #{tpu_custom_call.1} parent=1 // pred_fallthru
      _
    %p20 = scmp.eq.s32.totalorder 0, 0
    // Predicated region
    $region10: #{tpu_custom_call.1} parent=1 // pred_check
      %p21 = pneg %p20
    $region11: #{tpu_custom_call.1} parent=1 // pred_check_branch
      %23 = sbr.rel (%p21) target = $region13
    $region12: #{tpu_custom_call.1} parent=1 // pred_region
      %vm24 = vcmask 7168
      %25 = vst.msk [vmem:[%s1] sm:$0xff] %vm24, 1.0
    $region13: #{tpu_custom_call.1} parent=1 // pred_fallthru
      _
    %v26 = vld [vmem:[%s1] sm:$0xff]
    %v27 = vld [vmem:[#allocation2] sm:$0xff]
    %vm28 = vcmask 64512
    %v29 = vsel %vm28, %v27, 0.0
    %30 = vadd.xlane.f32.xlu0 %v29
    %v31 = vpop.xlane.xlu0 %30
    %v32 = vadd.f32 %v26, %v31
    %vm33 = vcmask 7168
    %34 = vst.msk [vmem:[%s1] sm:$0xff] %vm33, %v32
    // Predicated region
    $region14: #{tpu_custom_call.1} parent=1 // pred_check
      %p35 = pneg %p20
    $region15: #{tpu_custom_call.1} parent=1 // pred_check_branch
      %37 = sbr.rel (%p35) target = $region17
    $region16: #{tpu_custom_call.1} parent=1 // pred_region
      %v38 = vld [vmem:[%s1] sm:$0xff]
      %v39 = vrsqrt.pop %v38
      %40 = vst.msk [vmem:[%s1] sm:$0xff] %vm33, %v39
    $region17: #{tpu_custom_call.1} parent=1 // pred_fallthru
      _
    // Predicated region
    $region18: #{tpu_custom_call.1} parent=1 // pred_check
      _
    $region19: #{tpu_custom_call.1} parent=1 // pred_check_branch
      %42 = sbr.rel (0) target = $region21
    $region20: #{tpu_custom_call.1} parent=1 // pred_region
      _
    $region21: #{tpu_custom_call.1} parent=1 // pred_fallthru
      _
    // Predicated region
    $region22: #{tpu_custom_call.1} parent=1 // pred_check
      _
    $region23: #{tpu_custom_call.1} parent=1 // pred_check_branch
      %44 = sbr.rel (0) target = $region25
    $region24: #{tpu_custom_call.1} parent=1 // pred_region
      _
    $region25: #{tpu_custom_call.1} parent=1 // pred_fallthru
      _
    %45 = vsyncpa [#allocation3], 1

</llo_original>
